<compile_context>
chip_gen: v5e
topology: v5e:2x2
jax: 0.10.0
libtpu: 0.0.40
codegen_flags: <defaults>
</compile_context>

<pallas_src>
import math

import jax
import jax.numpy as jnp
from jax.experimental import pallas as pl
from jax.experimental.pallas import tpu as pltpu

_LOG_CLAMP = math.log(1e-8)  # clamp(preds, min=1e-8) expressed in log space


def _round_up(x: int, m: int) -> int:
    return (x + m - 1) // m * m


def _cdiv(a: int, b: int) -> int:
    return (a + b - 1) // b


def _vmem_limit_bytes() -> int:
    """Generation-aware scoped-VMEM limit (v7x has only 64 MiB per TensorCore)."""
    try:
        cap = int(pltpu.get_tpu_info().vmem_capacity_bytes)
    except Exception:
        cap = 64 * 1024 * 1024  # conservative fallback (v7x per-TC VMEM)
    return max(16 * 1024 * 1024, min((cap * 3) // 4, 96 * 1024 * 1024))


def _num_tensorcores() -> int:
    """2 TensorCores per chip on v7x (and v4/v5p megacore); 1 on v5e/v6e."""
    try:
        kind = jax.devices()[0].device_kind.lower()
    except Exception:
        return 1
    if "v7" in kind or "v4" in kind or "v5p" in kind:
        return 2
    return 1


def _make_ce_kernel(temperature: float, n_true: int, tn: int,
                    tiles_per_core: int, needs_mask: bool):
    inv_t = 1.0 / float(temperature)
    inv_n = 1.0 / float(n_true)

    def ce_kernel(out_ref, tgt_ref, loss_ref, acc_ref):
        i = pl.program_id(1)  # inner ("arbitrary") batch-tile axis carries the acc

        @pl.when(i == 0)
        def _init():
            acc_ref[...] = jnp.zeros_like(acc_ref)

        x = out_ref[...].astype(jnp.float32) * inv_t          # (tn, C)
        t = tgt_ref[...].astype(jnp.float32)                  # (tn, C)

        if needs_mask:
            # Partial / duplicated batch tiles: out-of-bounds rows are unspecified.
            # Mask the logits to a finite value AND the targets to 0 (garbage could be
            # NaN, and 0 * NaN = NaN would poison the accumulator).
            p = pl.program_id(0)
            row0 = (p * tiles_per_core + i) * tn               # un-clamped logical row
            rows = row0 + jax.lax.broadcasted_iota(jnp.int32, x.shape, 0)
            valid = rows < n_true
            x = jnp.where(valid, x, 0.0)
            t = jnp.where(valid, t, 0.0)

        # ---- log-softmax along the class (lane) axis ----
        m = jnp.max(x, axis=1, keepdims=True)                  # row max (XLU)
        xs = x - m
        lse = jnp.log(jnp.sum(jnp.exp(xs), axis=1, keepdims=True))
        # torch.clamp(preds, min=1e-8) then log  ==  max(logp, log(1e-8))
        logp = jnp.maximum(xs - lse, _LOG_CLAMP)

        acc_ref[...] += jnp.sum(t * logp, keepdims=True)       # (1, 1) f32, vector domain

        @pl.when(i == pl.num_programs(1) - 1)
        def _finalize():
            # Per-core partial of the final loss: -(sum over this core's rows) / N.
            partial = jnp.broadcast_to(acc_ref[...], loss_ref.shape)
            loss_ref[...] = (-inv_n) * partial

    return ce_kernel


def zero_padding_cross_entropy(output: jax.Array, target: jax.Array,
                               temperature: float = 0.1, *,
                               max_rows_per_tile: int | None = None,
                               num_parallel: int | None = None) -> jax.Array:
    """output, target: (N, C) arrays (f32 or bf16). Returns scalar float32 loss."""
    assert output.shape == target.shape and output.ndim == 2
    n, c = output.shape

    vmem_limit = _vmem_limit_bytes()

    # ---- batch-tile size: dtype- & generation-aware VMEM budget --------------------
    c_lanes = _round_up(c, 128)                         # physical lane footprint / row
    in_bytes = output.dtype.itemsize + target.dtype.itemsize
    bytes_per_row = 2 * c_lanes * in_bytes              # 2x: double-buffered pipeline
    bytes_per_row += 6 * c_lanes * 4                    # headroom for f32 body temps
    tn = (vmem_limit // 2) // bytes_per_row
    tn = max(8, min((tn // 8) * 8, 1024, _round_up(n, 8)))
    if max_rows_per_tile is not None:
        tn = max(8, min(tn, (max_rows_per_tile // 8) * 8))

    nblocks = _cdiv(n, tn)

    # ---- optional 2-way TensorCore split over batch halves --------------------------
    if num_parallel is None:
        num_parallel = _num_tensorcores() if nblocks >= 2 else 1
    num_parallel = max(1, min(int(num_parallel), nblocks))
    tiles_per_core = _cdiv(nblocks, num_parallel)

    covered_rows = num_parallel * tiles_per_core * tn
    needs_mask = covered_rows != n                      # partial / duplicated tiles
    needs_clamp = num_parallel * tiles_per_core > nblocks

    if needs_clamp:
        # Keep the DMA in bounds for the (at most one) surplus tile; the kernel's
        # un-clamped row mask zeroes its contribution.
        def row_block(p_, i_):
            return (jnp.minimum(p_ * tiles_per_core + i_, nblocks - 1), 0)
    else:
        def row_block(p_, i_):
            return (p_ * tiles_per_core + i_, 0)

    kernel = _make_ce_kernel(temperature, n, tn, tiles_per_core, needs_mask)

    cost = pl.CostEstimate(
        flops=6 * n * c,
        transcendentals=n * c + n,
        bytes_accessed=(output.size * output.dtype.itemsize
                        + target.size * target.dtype.itemsize
                        + num_parallel * 128 * 4),
    )

    partials = pl.pallas_call(
        kernel,
        out_shape=jax.ShapeDtypeStruct((num_parallel, 1, 128), jnp.float32),
        grid=(num_parallel, tiles_per_core),
        in_specs=[
            # Full class extent in one block: legal even when C % 128 != 0 (the
            # compiler masks the ragged lanes), so no wrapper-side padding/copies.
            pl.BlockSpec((tn, c), row_block),
            pl.BlockSpec((tn, c), row_block),
        ],
        out_specs=pl.BlockSpec((1, 1, 128), lambda p_, i_: (p_, 0, 0)),
        scratch_shapes=[pltpu.VMEM((1, 1), jnp.float32)],   # per-core running sum
        compiler_params=pltpu.CompilerParams(
            dimension_semantics=("parallel", "arbitrary"),
            vmem_limit_bytes=vmem_limit,
        ),
        cost_estimate=cost,
    )(output, target)

    # Each core's block already carries -(partial sum)/N; total loss is their sum.
    return jnp.sum(partials[:, 0, 0])


def _reference(output, target, temperature=0.1):
    x = output.astype(jnp.float32) / temperature
    p = jax.nn.softmax(x, axis=1)
    p = jnp.maximum(p, 1e-8)
    return -jnp.mean(jnp.sum(target.astype(jnp.float32) * jnp.log(p), axis=1))


if __name__ == "__main__":
    key = jax.random.PRNGKey(0)
    k1, k2, k3, k4, k5, k6 = jax.random.split(key, 6)

    # Case 1: small, single tile, ragged class dim (C=10 < 128, full-extent block).
    n1, c1 = 16, 10
    out1 = jax.random.normal(k1, (n1, c1), dtype=jnp.float32)
    tgt1 = jax.nn.softmax(jax.random.normal(k2, (n1, c1), dtype=jnp.float32), axis=1)
    loss1 = jax.block_until_ready(zero_padding_cross_entropy(out1, tgt1, temperature=0.1))
    ref1 = _reference(out1, tgt1, temperature=0.1)
    assert jnp.allclose(loss1, ref1, rtol=1e-5, atol=1e-5), (loss1, ref1)

    # Case 2: ragged batch (partial tile -> in-kernel row masking, no jnp.pad).
    n2, c2 = 13, 10
    out2 = jax.random.normal(k3, (n2, c2), dtype=jnp.float32)
    tgt2 = jax.nn.softmax(jax.random.normal(k4, (n2, c2), dtype=jnp.float32), axis=1)
    loss2 = jax.block_until_ready(zero_padding_cross_entropy(out2, tgt2, temperature=0.1))
    ref2 = _reference(out2, tgt2, temperature=0.1)
    assert jnp.allclose(loss2, ref2, rtol=1e-5, atol=1e-5), (loss2, ref2)

    # Case 3: ragged batch + ragged classes + multi-tile grid + forced 2-way core
    # split (exercises the clamped duplicate tile, tail masking, and zero-target
    # "zero padding" rows that must contribute exactly 0 while the mean divides by N).
    n3, c3 = 300, 200
    out3 = jax.random.normal(k5, (n3, c3), dtype=jnp.float32)
    tgt3 = jax.nn.softmax(jax.random.normal(k6, (n3, c3), dtype=jnp.float32), axis=1)
    tgt3 = tgt3.at[-5:].set(0.0)
    loss3 = jax.block_until_ready(
        zero_padding_cross_entropy(out3, tgt3, temperature=0.1,
                                   max_rows_per_tile=64, num_parallel=2))
    ref3 = _reference(out3, tgt3, temperature=0.1)
    assert jnp.allclose(loss3, ref3, rtol=2e-4, atol=1e-4), (loss3, ref3)

    print("KERNEL_OK")
</pallas_src>

<mosaic_0001>
module attributes {stable_mosaic.version = 11 : i64} {
  func.func @ce_kernel(%arg0: i32, %arg1: i32, %arg2: memref<16x10xf32, #tpu.memory_space<vmem>>, %arg3: memref<16x10xf32, #tpu.memory_space<vmem>>, %arg4: memref<1x1x128xf32, #tpu.memory_space<vmem>>, %arg5: memref<1x1xf32, #tpu.memory_space<vmem>>) attributes {dimension_semantics = [#tpu.dimension_semantics<parallel>, #tpu.dimension_semantics<arbitrary>], iteration_bounds = array<i64: 1, 1>, scalar_prefetch = 0 : i64, scratch_operands = 1 : i64, tpu.core_type = #tpu.core_type<tc>, window_params = [{transform_indices = @transform_0, window_bounds = array<i64: 16, 10>}, {transform_indices = @transform_1, window_bounds = array<i64: 16, 10>}, {transform_indices = @transform_2, window_bounds = array<i64: 1, 1, 128>}]} {
    %c0_i32 = arith.constant 0 : i32
    %0 = arith.cmpi eq, %arg1, %c0_i32 : i32
    %1 = arith.extui %0 : i1 to i32
    %c0_i32_0 = arith.constant 0 : i32
    %2 = arith.cmpi ne, %1, %c0_i32_0 : i32
    scf.if %2 {
      %cst_14 = arith.constant 0.000000e+00 : f32
      %31 = vector.broadcast %cst_14 : f32 to vector<1x1xf32>
      %c0_15 = arith.constant 0 : index
      %c0_16 = arith.constant 0 : index
      %32 = vector.load %arg5[%c0_15, %c0_16] : memref<1x1xf32, #tpu.memory_space<vmem>>, vector<1x1xf32>
      tpu.vector_store %arg5[%c0_15, %c0_16], %31 {strides = array<i32>} : memref<1x1xf32, #tpu.memory_space<vmem>>, vector<1x1xf32>,
    } else {
    }
    %c0 = arith.constant 0 : index
    %c0_1 = arith.constant 0 : index
    %3 = vector.load %arg2[%c0, %c0_1] : memref<16x10xf32, #tpu.memory_space<vmem>>, vector<16x10xf32>
    %cst = arith.constant 1.000000e+01 : f32
    %4 = vector.broadcast %cst : f32 to vector<16x10xf32>
    %5 = arith.mulf %3, %4 : vector<16x10xf32>
    %c0_2 = arith.constant 0 : index
    %c0_3 = arith.constant 0 : index
    %6 = vector.load %arg3[%c0_2, %c0_3] : memref<16x10xf32, #tpu.memory_space<vmem>>, vector<16x10xf32>
    %cst_4 = arith.constant dense<0xFF800000> : vector<16xf32>
    %7 = vector.multi_reduction <maximumf>, %5, %cst_4 [1] : vector<16x10xf32> to vector<16xf32>
    %8 = vector.shape_cast %7 : vector<16xf32> to vector<16x1xf32>
    %9 = vector.broadcast %8 : vector<16x1xf32> to vector<16x10xf32>
    %10 = arith.subf %5, %9 : vector<16x10xf32>
    %11 = math.exp %10 : vector<16x10xf32>
    %cst_5 = arith.constant dense<0.000000e+00> : vector<16xf32>
    %12 = vector.multi_reduction <add>, %11, %cst_5 [1] : vector<16x10xf32> to vector<16xf32>
    %13 = vector.shape_cast %12 : vector<16xf32> to vector<16x1xf32>
    %14 = math.log %13 : vector<16x1xf32>
    %15 = vector.broadcast %14 : vector<16x1xf32> to vector<16x10xf32>
    %16 = arith.subf %10, %15 : vector<16x10xf32>
    %cst_6 = arith.constant -18.420681 : f32
    %17 = vector.broadcast %cst_6 : f32 to vector<16x10xf32>
    %18 = arith.maximumf %16, %17 : vector<16x10xf32>
    %c0_7 = arith.constant 0 : index
    %c0_8 = arith.constant 0 : index
    %19 = vector.load %arg5[%c0_7, %c0_8] : memref<1x1xf32, #tpu.memory_space<vmem>>, vector<1x1xf32>
    %20 = arith.mulf %6, %18 : vector<16x10xf32>
    %21 = vector.shape_cast %20 : vector<16x10xf32> to vector<1x16x10xf32>
    %cst_9 = arith.constant dense<0.000000e+00> : vector<1xf32>
    %22 = vector.multi_reduction <add>, %21, %cst_9 [1, 2] : vector<1x16x10xf32> to vector<1xf32>
    %23 = vector.shape_cast %22 : vector<1xf32> to vector<1x1x1xf32>
    %24 = vector.extract %23[0, 0, 0] : f32 from vector<1x1x1xf32>
    %25 = vector.broadcast %24 : f32 to vector<1x1xf32>
    %26 = arith.addf %19, %25 : vector<1x1xf32>
    %c0_10 = arith.constant 0 : index
    %c0_11 = arith.constant 0 : index
    %27 = vector.load %arg5[%c0_10, %c0_11] : memref<1x1xf32, #tpu.memory_space<vmem>>, vector<1x1xf32>
    tpu.vector_store %arg5[%c0_10, %c0_11], %26 {strides = array<i32>} : memref<1x1xf32, #tpu.memory_space<vmem>>, vector<1x1xf32>,
    %c0_i32_12 = arith.constant 0 : i32
    %28 = arith.cmpi eq, %arg1, %c0_i32_12 : i32
    %29 = arith.extui %28 : i1 to i32
    %c0_i32_13 = arith.constant 0 : i32
    %30 = arith.cmpi ne, %29, %c0_i32_13 : i32
    scf.if %30 {
      %c0_14 = arith.constant 0 : index
      %c0_15 = arith.constant 0 : index
      %31 = vector.load %arg5[%c0_14, %c0_15] : memref<1x1xf32, #tpu.memory_space<vmem>>, vector<1x1xf32>
      %32 = vector.shape_cast %31 : vector<1x1xf32> to vector<1x1x1xf32>
      %33 = vector.broadcast %32 : vector<1x1x1xf32> to vector<1x1x128xf32>
      %cst_16 = arith.constant -6.250000e-02 : f32
      %34 = vector.broadcast %cst_16 : f32 to vector<1x1x128xf32>
      %35 = arith.mulf %34, %33 : vector<1x1x128xf32>
      %c0_17 = arith.constant 0 : index
      %c0_18 = arith.constant 0 : index
      %c0_19 = arith.constant 0 : index
      %36 = vector.load %arg4[%c0_17, %c0_18, %c0_19] : memref<1x1x128xf32, #tpu.memory_space<vmem>>, vector<1x1x128xf32>
      tpu.vector_store %arg4[%c0_17, %c0_18, %c0_19], %35 {strides = array<i32>} : memref<1x1x128xf32, #tpu.memory_space<vmem>>, vector<1x1x128xf32>,
    } else {
    }
    return
  }
  func.func @transform_0(%arg0: i32, %arg1: i32) -> (i32, i32) {
    %c1_i32 = arith.constant 1 : i32
    %0 = arith.muli %arg0, %c1_i32 : i32
    %1 = arith.addi %0, %arg1 : i32
    %c0_i32 = arith.constant 0 : i32
    %c0_i32_0 = arith.constant 0 : i32
    return %1, %c0_i32 : i32, i32
  }
  func.func @transform_1(%arg0: i32, %arg1: i32) -> (i32, i32) {
    %c1_i32 = arith.constant 1 : i32
    %0 = arith.muli %arg0, %c1_i32 : i32
    %1 = arith.addi %0, %arg1 : i32
    %c0_i32 = arith.constant 0 : i32
    %c0_i32_0 = arith.constant 0 : i32
    return %1, %c0_i32 : i32, i32
  }
  func.func @transform_2(%arg0: i32, %arg1: i32) -> (i32, i32, i32) {
    %c0_i32 = arith.constant 0 : i32
    %c0_i32_0 = arith.constant 0 : i32
    %c0_i32_1 = arith.constant 0 : i32
    return %arg0, %c0_i32, %c0_i32_0 : i32, i32, i32
  }
}

</mosaic_0001>

<llo_original>
// kernel: tpu_custom_call.1
$region0: #{tpu_custom_call.1}
  #allocation0 [shape = 'u32[]', space=smem, size = 0x4, offset = 0x4, fixed_abs, tag = 'smem constant byte address 0x4 - core index']
  #allocation1 [shape = 'u32[72,128]{1,0:T(1,128)}', space=vmem, size = 0x9000, scoped, tag = 'internal scratch']
  #allocation2 [shape = 'f32[1,1]{1,0:T(1,128)}', space=vmem, size = 0x200, scoped, tag = 'scratch operand']
  %s0 = inlined_call_operand.hbm [shape: f32[16,10], index: 0, kind: input, shape index: {}]
  %s1 = inlined_call_operand.hbm [shape: f32[16,10], index: 1, kind: input, shape index: {}]
  %s2 = inlined_call_operand.hbm [shape: f32[1,1,128], index: 2, kind: output, shape index: {}]
  %s3 = sld [smem:[#allocation0]]
  $region34: #{tpu_custom_call.1} parent=0
    _
  %s5 = ssub.s32 1, %s3
  %s6 = scalar_select 0, %s5, %s3
  $region1: #{tpu_custom_call.1} parent=0
    #allocation3 [shape = 'u8[8192]{0}', space=vmem, size = 0x2000, scoped, tag = 'input window, operand 0, single buffered']
    #allocation4 [shape = 's32[1]{0}', space=sflag, size = 0x4, scoped, tag = 'scoped memory for tpu_custom_call.1']
    #allocation5 [shape = 's32[1]{0}', space=sflag, size = 0x4, scoped, tag = 'scoped memory for tpu_custom_call.1']
    #allocation6 [shape = 'u8[8192]{0}', space=vmem, size = 0x2000, scoped, tag = 'input window, operand 1, single buffered']
    #allocation7 [shape = 's32[1]{0}', space=sflag, size = 0x4, scoped, tag = 'scoped memory for tpu_custom_call.1']
    #allocation8 [shape = 'u8[512]{0}', space=vmem, size = 0x400, scoped, tag = 'output window, operand 0, single buffered']
    %7 = vsyncpa [#allocation4], 0
    %8 = vsyncpa [#allocation7], 0
    %9 = vsyncpa [#allocation5], 0
    // Predicated region
    $region2: #{tpu_custom_call.1} parent=1 // pred_check
      _
    $region3: #{tpu_custom_call.1} parent=1 // pred_check_branch
      %11 = sbr.rel (0) target = $region5
    $region4: #{tpu_custom_call.1} parent=1 // pred_region
      %s12 = sadd.s32 0, 0
      %s13 = smul.u32 2, %s12
      %15 = vsyncadd [#allocation4], 0
      %s16 = smul.addr %s13, 8
      %s17 = scalar_lea.hbm %s0, %s16
      %s18 = sshll.u32 %s17, 4
      %s19 = int_to_ptr.hbm [resolvable:$true] %s18
      %s20 = sshll.u32 [#allocation3], 4
      %s21 = int_to_ptr.vmem [resolvable:$true] %s20
      %26 = dma.hbm_to_vmem [thread:$0]  %s19, 256, %s21, [#allocation4], 128, 128, 8
    $region5: #{tpu_custom_call.1} parent=1 // pred_fallthru
      _
    // Predicated region
    $region6: #{tpu_custom_call.1} parent=1 // pred_check
      _
    $region7: #{tpu_custom_call.1} parent=1 // pred_check_branch
      %28 = sbr.rel (0) target = $region9
    $region8: #{tpu_custom_call.1} parent=1 // pred_region
      %s29 = sadd.s32 0, 0
      %s30 = smul.u32 2, %s29
      %32 = vsyncadd [#allocation7], 0
      %s33 = smul.addr %s30, 8
      %s34 = scalar_lea.hbm %s1, %s33
      %s35 = sshll.u32 %s34, 4
      %s36 = int_to_ptr.hbm [resolvable:$true] %s35
      %s37 = sshll.u32 [#allocation6], 4
      %s38 = int_to_ptr.vmem [resolvable:$true] %s37
      %43 = dma.hbm_to_vmem [thread:$0]  %s36, 256, %s38, [#allocation7], 128, 128, 8
    $region9: #{tpu_custom_call.1} parent=1 // pred_fallthru
      _
    // Predicated region
    $region10: #{tpu_custom_call.1} parent=1 // pred_check
      _
    $region11: #{tpu_custom_call.1} parent=1 // pred_check_branch
      %45 = sbr.rel (0) target = $region13
    $region12: #{tpu_custom_call.1} parent=1 // pred_region
      %47 = dma.done [#allocation4], 256
    $region13: #{tpu_custom_call.1} parent=1 // pred_fallthru
      _
    // Predicated region
    $region14: #{tpu_custom_call.1} parent=1 // pred_check
      _
    $region15: #{tpu_custom_call.1} parent=1 // pred_check_branch
      %49 = sbr.rel (0) target = $region17
    $region16: #{tpu_custom_call.1} parent=1 // pred_region
      %51 = dma.done [#allocation7], 256
    $region17: #{tpu_custom_call.1} parent=1 // pred_fallthru
      _
    %s52 = sadd.s32 0, 0
    %s53 = smul.u32 2, %s52
    %s54 = sadd.s32 0, 0
    %s55 = smul.u32 2, %s54
    %p56 = scmp.eq.s32.totalorder 0, 0
    // Predicated region
    $region18: #{tpu_custom_call.1} parent=1 // pred_check
      %p57 = pneg %p56
    $region19: #{tpu_custom_call.1} parent=1 // pred_check_branch
      %59 = sbr.rel (%p57) target = $region21
    $region20: #{tpu_custom_call.1} parent=1 // pred_region
      %vm60 = vcmask 0
      %61 = vst.msk [vmem:[#allocation2] sm:$0x1] %vm60, 0.0
    $region21: #{tpu_custom_call.1} parent=1 // pred_fallthru
      _
    %v62 = vld [vmem:[#allocation3] sm:$0xff]
    %v63 = vld [vmem:[#allocation3 + $0x8] sm:$0xff]
    %v64 = vmul.f32 %v62, 10.0
    %v65 = vmul.f32 %v63, 10.0
    %v66 = vld [vmem:[#allocation6] sm:$0xff]
    %v67 = vld [vmem:[#allocation6 + $0x8] sm:$0xff]
    %vm68 = vcmask 80896
    %v69 = vsel %vm68, %v64, -inf
    %70 = vmax.xlane.f32.xlu0 %v69
    %v71 = vpop.xlane.xlu0 %70
    %v72 = vsel %vm68, %v65, -inf
    %73 = vmax.xlane.f32.xlu0 %v72
    %v74 = vpop.xlane.xlu0 %73
    %v75 = vsub.f32 %v64, %v71
    %v76 = vsub.f32 %v65, %v74
    %v77 = vmul.f32 %v75, 1.442695
    %v78 = vpow.pop %v77
    %v79 = vmul.f32 %v76, 1.442695
    %v80 = vpow.pop %v79
    %v81 = vsel %vm68, %v78, 0.0
    %82 = vadd.xlane.f32.xlu0 %v81
    %v83 = vpop.xlane.xlu0 %82
    %v84 = vsel %vm68, %v80, 0.0
    %85 = vadd.xlane.f32.xlu0 %v84
    %v86 = vpop.xlane.xlu0 %85
    %v87 = vlog2.pop %v83
    %v88 = vmul.f32 %v87, 0.6931472
    %v89 = vlog2.pop %v86
    %v90 = vmul.f32 %v89, 0.6931472
    %v91 = vsub.f32 %v75, %v88
    %v92 = vsub.f32 %v76, %v90
    %v93 = vmax.f32 %v91, -18.420681
    %v94 = vmax.f32 %v92, -18.420681
    %v95 = vld [vmem:[#allocation2] sm:$0x1]
    %v96 = vmul.f32 %v66, %v93
    %v97 = vmul.f32 %v67, %v94
    %v98 = vsel %vm68, %v96, 0.0
    %v99 = vsel %vm68, %v97, 0.0
    %v100 = vadd.f32 %v98, %v99
    %101 = vadd.xlane.f32.xlu0 %v100
    %v102 = vpop.xlane.xlu0 %101
    %v103 = vrot.slane %v102, 4
    %v104 = vadd.f32 %v102, %v103
    %v105 = vrot.slane %v104, 2
    %v106 = vadd.f32 %v104, %v105
    %v107 = vrot.slane %v106, 1
    %v108 = vadd.f32 %v106, %v107
    %s109 = vtos %v108
    %v110 = vstv %s109
    %v111 = vadd.f32 %v95, %v110
    %vm112 = vcmask 0
    %113 = vst.msk [vmem:[#allocation2] sm:$0x1] %vm112, %v111
    // Predicated region
    $region22: #{tpu_custom_call.1} parent=1 // pred_check
      %p114 = pneg %p56
    $region23: #{tpu_custom_call.1} parent=1 // pred_check_branch
      %116 = sbr.rel (%p114) target = $region25
    $region24: #{tpu_custom_call.1} parent=1 // pred_region
      %v117 = vld [vmem:[#allocation2] sm:$0x1]
      %119 = vset.pattern.permute.xlu0 0
      %120 = vperm.xlu0 %119, %v117
      %v121 = vpop.permute.xlu0 %120
      %v123 = vperm.slane %v121, 0
      %v124 = vmul.f32 %v123, -0.0625
      %125 = vst [vmem:[#allocation8] sm:$0x1] %v124
    $region25: #{tpu_custom_call.1} parent=1 // pred_fallthru
      _
    // Predicated region
    $region26: #{tpu_custom_call.1} parent=1 // pred_check
      _
    $region27: #{tpu_custom_call.1} parent=1 // pred_check_branch
      %127 = sbr.rel (0) target = $region29
    $region28: #{tpu_custom_call.1} parent=1 // pred_region
      %129 = vsyncadd [#allocation5], 0
      %s131 = sshll.u32 [#allocation8], 4
      %s132 = int_to_ptr.vmem [resolvable:$true] %s131
      %s133 = sshll.u32 %s2, 4
      %s134 = int_to_ptr.hbm [resolvable:$true] %s133
      %136 = dma.vmem_to_hbm [thread:$0]  %s132, 16, %s134, [#allocation5]
    $region29: #{tpu_custom_call.1} parent=1 // pred_fallthru
      _
    // Predicated region
    $region30: #{tpu_custom_call.1} parent=1 // pred_check
      _
    $region31: #{tpu_custom_call.1} parent=1 // pred_check_branch
      %138 = sbr.rel (0) target = $region33
    $region32: #{tpu_custom_call.1} parent=1 // pred_region
      %140 = dma.done [#allocation5], 16
    $region33: #{tpu_custom_call.1} parent=1 // pred_fallthru
      _
    %141 = vsyncpa [#allocation4], 1
    %142 = vsyncpa [#allocation7], 1
    %143 = vsyncpa [#allocation5], 1

</llo_original>
